<compile_context>
chip_gen: v7x
topology: tpu7x:2x2x1
jax: 0.10.0
libtpu: 0.0.40
codegen_flags: <defaults>
</compile_context>

<pallas_src>
import functools

import jax
import jax.numpy as jnp
from jax.experimental import pallas as pl
from jax.experimental.pallas import tpu as pltpu

D_IN = 8 * 8 * 3          # 192
H_SPATIAL = 4 * 4 * 32    # 512
D_MU = 4 * 4 * 16         # 256 (mu columns only; logvar dropped on this path)
D_SAMPLE = 16
D_TASK = 10
HEADS_W = 128             # lane-dense packed (sample | task | pad)
FUSED_W = D_MU + HEADS_W  # 384
OUT_W = FUSED_W           # merged output slab: (mu | sample | task | pad)


def _round_up(x, m):
    return ((x + m - 1) // m) * m


def scale_block_kernel(x_ref, ws_ref, bs_ref, wf_ref, bf_ref, wp_ref, out_ref):
    # spatial MLP: Linear(192 -> 512) + ReLU.  f32 input is cast to bf16
    # in-kernel (no wrapper-side cast pass); accumulate in f32, bias+ReLU f32.
    x = x_ref[...].astype(jnp.bfloat16)
    h = jnp.dot(x, ws_ref[...], preferred_element_type=jnp.float32)
    h = jnp.maximum(h + bs_ref[...], 0.0)                       # (TM, 512) f32

    # One wide fused matmul over h:
    #   cols [0:256)   prior mu (columns permuted so mu is contiguous)
    #   cols [256:272) posterior sample, h contribution
    #   cols [272:282) task logits, h contribution (task Linear folded)
    f = jnp.dot(h.astype(jnp.bfloat16), wf_ref[...],
                preferred_element_type=jnp.float32) + bf_ref[...]   # (TM, 384)

    # prior MLP output (mu half only), ReLU; 128-aligned slice.
    p_mu = jnp.maximum(f[:, :D_MU], 0.0)                        # (TM, 256) f32

    # heads: add the mu contribution of the posterior + folded task head.
    heads = f[:, D_MU:] + jnp.dot(p_mu.astype(jnp.bfloat16), wp_ref[...],
                                  preferred_element_type=jnp.float32)

    # Merged lane-dense output slab, stored bf16 (halves writeback traffic).
    out_ref[:, :D_MU] = p_mu.astype(out_ref.dtype)
    out_ref[:, D_MU:] = heads.astype(out_ref.dtype)


def init_params(key):
    """PyTorch-equivalent parameters, stored transposed as (in, out)."""
    ks = jax.random.split(key, 5)
    scale = 0.02

    def lin(k, fan_in, fan_out):
        kw, kb = jax.random.split(k)
        w = scale * jax.random.normal(kw, (fan_in, fan_out), jnp.float32)
        b = scale * jax.random.normal(kb, (1, fan_out), jnp.float32)
        return w, b

    w_s, b_s = lin(ks[0], D_IN, H_SPATIAL)                    # spatial (192, 512)
    w_pr, b_pr = lin(ks[1], H_SPATIAL, H_SPATIAL)             # prior   (512, 512)
    w_post, b_post = lin(ks[2], 4 * 4 * (32 + 16), D_SAMPLE)  # posterior (768, 16)
    w_pol, b_pol = lin(ks[3], H_SPATIAL, 16)                  # policy (unused, mask=None)
    w_t, b_t = lin(ks[4], D_SAMPLE, D_TASK)                   # task (16, 10)
    return dict(w_s=w_s, b_s=b_s, w_pr=w_pr, b_pr=b_pr,
                w_post=w_post, b_post=b_post,
                w_pol=w_pol, b_pol=b_pol, w_t=w_t, b_t=b_t)


def fuse_params(p):
    """Build the fused / pruned / folded resident weights used by the kernel."""
    # Permute prior output columns so mu occupies a contiguous 256-wide block.
    w_pr_mu = p["w_pr"].reshape(H_SPATIAL, 16, 32)[:, :, :16].reshape(H_SPATIAL, D_MU)
    b_pr_mu = p["b_pr"].reshape(1, 16, 32)[:, :, :16].reshape(1, D_MU)

    # Split posterior weight into its h rows and mu rows.
    # Posterior input ordering per spatial position i: [h_i (32), mu_i (16)].
    w3 = p["w_post"].reshape(16, 48, D_SAMPLE)
    w_post_h = w3[:, :32, :].reshape(H_SPATIAL, D_SAMPLE)      # (512, 16)
    w_post_p = w3[:, 32:, :].reshape(D_MU, D_SAMPLE)           # (256, 16)

    # Fold the task Linear(16 -> 10) into the posterior weights (exact fold).
    w_task_h = w_post_h @ p["w_t"]                             # (512, 10)
    w_task_p = w_post_p @ p["w_t"]                             # (256, 10)
    b_task = p["b_post"] @ p["w_t"] + p["b_t"]                 # (1, 10)

    w_fused = jnp.zeros((H_SPATIAL, FUSED_W), jnp.float32)
    w_fused = w_fused.at[:, :D_MU].set(w_pr_mu)
    w_fused = w_fused.at[:, D_MU:D_MU + D_SAMPLE].set(w_post_h)
    w_fused = w_fused.at[:, D_MU + D_SAMPLE:D_MU + D_SAMPLE + D_TASK].set(w_task_h)

    b_fused = jnp.zeros((1, FUSED_W), jnp.float32)
    b_fused = b_fused.at[:, :D_MU].set(b_pr_mu)
    b_fused = b_fused.at[:, D_MU:D_MU + D_SAMPLE].set(p["b_post"])
    b_fused = b_fused.at[:, D_MU + D_SAMPLE:D_MU + D_SAMPLE + D_TASK].set(b_task)

    w_p_heads = jnp.zeros((D_MU, HEADS_W), jnp.float32)
    w_p_heads = w_p_heads.at[:, :D_SAMPLE].set(w_post_p)
    w_p_heads = w_p_heads.at[:, D_SAMPLE:D_SAMPLE + D_TASK].set(w_task_p)

    return dict(w_s=p["w_s"].astype(jnp.bfloat16), b_s=p["b_s"],
                w_fused=w_fused.astype(jnp.bfloat16), b_fused=b_fused,
                w_p_heads=w_p_heads.astype(jnp.bfloat16))


def _choose_tiling(n, tile_m):
    """Balanced batch tiles (multiple of 16); >=2 grid steps for v7x megacore."""
    n16 = _round_up(max(n, 1), 16)
    num_tiles = max(1, pl.cdiv(n16, tile_m))
    if n16 >= 64:
        num_tiles = max(num_tiles, 2)      # keep both v7x TensorCores fed
    tm = _round_up(pl.cdiv(n16, num_tiles), 16)
    n_pad = _round_up(n16, tm)
    return tm, n_pad


def _vmem_limit_bytes(tm):
    """Working-set estimate clamped to [32 MiB, 48 MiB]: above v5e's 16 MiB
    scoped default, below v7x's 64 MiB physical VMEM."""
    x_buf = 2 * tm * D_IN * 4                         # double-buffered f32 input
    out_buf = 2 * tm * OUT_W * 2                      # double-buffered bf16 output
    weights = 2 * 2 * (D_IN * H_SPATIAL + H_SPATIAL * FUSED_W + D_MU * HEADS_W)
    biases = 2 * 4 * (H_SPATIAL + FUSED_W)
    interm = tm * (H_SPATIAL * 6 + FUSED_W * 4 + D_MU * 6 + HEADS_W * 4)
    est = x_buf + out_buf + weights + biases + interm
    return max(32 << 20, min((est * 3) // 2, 48 << 20))


@functools.partial(jax.jit, static_argnames=("tile_m",))
def scale_block_forward(inputs, fused, *, tile_m=2048):
    """inputs: (N, 3, 8, 8) float32 NCHW.  Returns (task, aux) for mask=None.

    tile_m=2048 amortizes per-grid-step overhead and fits every generation's
    VMEM budget; on v6e (128 MiB VMEM, HBM-leaning) tile_m=4096 is also fine.
    """
    n = inputs.shape[0]
    x = inputs.reshape(n, D_IN)                        # f32; bf16 cast is in-kernel

    tm, n_pad = _choose_tiling(n, tile_m)
    if n_pad != n:
        x = jnp.pad(x, ((0, n_pad - n), (0, 0)))
    grid = (n_pad // tm,)

    flops = 2 * n_pad * (D_IN * H_SPATIAL + H_SPATIAL * FUSED_W + D_MU * HEADS_W)
    bytes_accessed = (n_pad * D_IN * 4 + n_pad * OUT_W * 2
                      + (D_IN * H_SPATIAL + H_SPATIAL * FUSED_W + D_MU * HEADS_W) * 2
                      + (H_SPATIAL + FUSED_W) * 4)

    out = pl.pallas_call(
        scale_block_kernel,
        out_shape=jax.ShapeDtypeStruct((n_pad, OUT_W), jnp.bfloat16),
        grid_spec=pltpu.PrefetchScalarGridSpec(
            num_scalar_prefetch=0,
            grid=grid,
            in_specs=[
                pl.BlockSpec((tm, D_IN), lambda i: (i, 0)),            # x (tiled)
                pl.BlockSpec((D_IN, H_SPATIAL), lambda i: (0, 0)),     # resident weights
                pl.BlockSpec((1, H_SPATIAL), lambda i: (0, 0)),
                pl.BlockSpec((H_SPATIAL, FUSED_W), lambda i: (0, 0)),
                pl.BlockSpec((1, FUSED_W), lambda i: (0, 0)),
                pl.BlockSpec((D_MU, HEADS_W), lambda i: (0, 0)),
            ],
            out_specs=pl.BlockSpec((tm, OUT_W), lambda i: (i, 0)),
        ),
        compiler_params=pltpu.CompilerParams(
            dimension_semantics=("parallel",),
            vmem_limit_bytes=_vmem_limit_bytes(tm)),
        cost_estimate=pl.CostEstimate(flops=flops, transcendentals=0,
                                      bytes_accessed=bytes_accessed),
    )(x, fused["w_s"], fused["b_s"], fused["w_fused"], fused["b_fused"],
      fused["w_p_heads"])

    mu = out[:n, :D_MU].reshape(n, 16, 16)                        # prior Normal(mu,1) mean
    sample = out[:n, D_MU:D_MU + D_SAMPLE]                        # posterior sample (N,16)
    task = out[:n, D_MU + D_SAMPLE:D_MU + D_SAMPLE + D_TASK]      # task logits     (N,10)
    aux = dict(prior_mu=mu, prior_std=1.0, posterior=sample, policy=None)
    return task, aux


def reference_forward(inputs, p):
    """Pure-JAX f32 reference of the PyTorch forward (mask=None path).
    Uses the same Linear->ReLU assumption for MLP as the kernel."""
    n = inputs.shape[0]
    x = inputs.reshape(n, D_IN)
    h = jnp.maximum(x @ p["w_s"] + p["b_s"], 0.0)
    pr = jnp.maximum(h @ p["w_pr"] + p["b_pr"], 0.0)
    mu = pr.reshape(n, 16, 32)[:, :, :16]                          # (n, 16, 16)
    post_in = jnp.concatenate([h.reshape(n, 16, 32), mu], axis=-1).reshape(n, 16 * 48)
    sample = post_in @ p["w_post"] + p["b_post"]
    task = sample @ p["w_t"] + p["b_t"]
    return task, mu, sample


if __name__ == "__main__":
    key = jax.random.PRNGKey(0)
    k_in, k_p = jax.random.split(key)
    inputs = jax.random.normal(k_in, (2, 3, 8, 8), jnp.float32)  # N=2, CIFAR 8x8 crop
    params = init_params(k_p)
    fused = fuse_params(params)

    task, aux = scale_block_forward(inputs, fused)
    jax.block_until_ready((task, aux["prior_mu"], aux["posterior"]))

    assert task.shape == (2, 10)
    assert aux["prior_mu"].shape == (2, 16, 16)
    assert aux["posterior"].shape == (2, 16)

    # Numerical check against the pure-JAX f32 reference (bf16 weights/outputs
    # in the kernel => loose tolerance).
    t_ref, mu_ref, s_ref = reference_forward(inputs, params)
    assert jnp.allclose(task.astype(jnp.float32), t_ref, rtol=0.1, atol=1e-2)
    assert jnp.allclose(aux["prior_mu"].astype(jnp.float32), mu_ref, rtol=0.1, atol=1e-2)
    assert jnp.allclose(aux["posterior"].astype(jnp.float32), s_ref, rtol=0.1, atol=1e-2)

    print("KERNEL_OK")
</pallas_src>

<mosaic_0001>
module attributes {stable_mosaic.version = 11 : i64} {
  func.func @scale_block_kernel(%arg0: i32, %arg1: memref<16x192xf32, #tpu.memory_space<vmem>>, %arg2: memref<192x512xbf16, #tpu.memory_space<vmem>>, %arg3: memref<1x512xf32, #tpu.memory_space<vmem>>, %arg4: memref<512x384xbf16, #tpu.memory_space<vmem>>, %arg5: memref<1x384xf32, #tpu.memory_space<vmem>>, %arg6: memref<256x128xbf16, #tpu.memory_space<vmem>>, %arg7: memref<16x384xbf16, #tpu.memory_space<vmem>>) attributes {dimension_semantics = [#tpu.dimension_semantics<parallel>], iteration_bounds = array<i64: 1>, scalar_prefetch = 0 : i64, scratch_operands = 0 : i64, tpu.core_type = #tpu.core_type<tc>, window_params = [{transform_indices = @transform_0, window_bounds = array<i64: 16, 192>}, {pipeline_mode = #tpu.pipeline_mode<synchronous>, transform_indices = @transform_1, window_bounds = array<i64: 192, 512>}, {pipeline_mode = #tpu.pipeline_mode<synchronous>, transform_indices = @transform_2, window_bounds = array<i64: 1, 512>}, {pipeline_mode = #tpu.pipeline_mode<synchronous>, transform_indices = @transform_3, window_bounds = array<i64: 512, 384>}, {pipeline_mode = #tpu.pipeline_mode<synchronous>, transform_indices = @transform_4, window_bounds = array<i64: 1, 384>}, {pipeline_mode = #tpu.pipeline_mode<synchronous>, transform_indices = @transform_5, window_bounds = array<i64: 256, 128>}, {transform_indices = @transform_6, window_bounds = array<i64: 16, 384>}]} {
    %c0 = arith.constant 0 : index
    %c0_0 = arith.constant 0 : index
    %0 = vector.load %arg1[%c0, %c0_0] : memref<16x192xf32, #tpu.memory_space<vmem>>, vector<16x192xf32>
    %1 = arith.truncf %0 : vector<16x192xf32> to vector<16x192xbf16>
    %c0_1 = arith.constant 0 : index
    %c0_2 = arith.constant 0 : index
    %2 = vector.load %arg2[%c0_1, %c0_2] : memref<192x512xbf16, #tpu.memory_space<vmem>>, vector<192x512xbf16>
    %cst = arith.constant dense<0.000000e+00> : vector<16x512xf32>
    %3 = tpu.matmul %1, %2, %cst {dimension_numbers = #tpu.dot_dimension_numbers<[1], [0], [0], [1], [0, 0, 1, 1], [], []>} : vector<16x192xbf16>, vector<192x512xbf16>, vector<16x512xf32> -> vector<16x512xf32>
    %c0_3 = arith.constant 0 : index
    %c0_4 = arith.constant 0 : index
    %4 = vector.load %arg3[%c0_3, %c0_4] : memref<1x512xf32, #tpu.memory_space<vmem>>, vector<1x512xf32>
    %5 = vector.broadcast %4 : vector<1x512xf32> to vector<16x512xf32>
    %6 = arith.addf %3, %5 : vector<16x512xf32>
    %cst_5 = arith.constant 0.000000e+00 : f32
    %7 = vector.broadcast %cst_5 : f32 to vector<16x512xf32>
    %8 = arith.maximumf %6, %7 : vector<16x512xf32>
    %9 = arith.truncf %8 : vector<16x512xf32> to vector<16x512xbf16>
    %c0_6 = arith.constant 0 : index
    %c0_7 = arith.constant 0 : index
    %10 = vector.load %arg4[%c0_6, %c0_7] : memref<512x384xbf16, #tpu.memory_space<vmem>>, vector<512x384xbf16>
    %cst_8 = arith.constant dense<0.000000e+00> : vector<16x384xf32>
    %11 = tpu.matmul %9, %10, %cst_8 {dimension_numbers = #tpu.dot_dimension_numbers<[1], [0], [0], [1], [0, 0, 1, 1], [], []>} : vector<16x512xbf16>, vector<512x384xbf16>, vector<16x384xf32> -> vector<16x384xf32>
    %c0_9 = arith.constant 0 : index
    %c0_10 = arith.constant 0 : index
    %12 = vector.load %arg5[%c0_9, %c0_10] : memref<1x384xf32, #tpu.memory_space<vmem>>, vector<1x384xf32>
    %13 = vector.broadcast %12 : vector<1x384xf32> to vector<16x384xf32>
    %14 = arith.addf %11, %13 : vector<16x384xf32>
    %15 = vector.extract_strided_slice %14 {offsets = [0, 0], sizes = [16, 256], strides = [1, 1]} : vector<16x384xf32> to vector<16x256xf32>
    %cst_11 = arith.constant 0.000000e+00 : f32
    %16 = vector.broadcast %cst_11 : f32 to vector<16x256xf32>
    %17 = arith.maximumf %15, %16 : vector<16x256xf32>
    %18 = vector.extract_strided_slice %14 {offsets = [0, 256], sizes = [16, 128], strides = [1, 1]} : vector<16x384xf32> to vector<16x128xf32>
    %19 = arith.truncf %17 : vector<16x256xf32> to vector<16x256xbf16>
    %c0_12 = arith.constant 0 : index
    %c0_13 = arith.constant 0 : index
    %20 = vector.load %arg6[%c0_12, %c0_13] : memref<256x128xbf16, #tpu.memory_space<vmem>>, vector<256x128xbf16>
    %cst_14 = arith.constant dense<0.000000e+00> : vector<16x128xf32>
    %21 = tpu.matmul %19, %20, %cst_14 {dimension_numbers = #tpu.dot_dimension_numbers<[1], [0], [0], [1], [0, 0, 1, 1], [], []>} : vector<16x256xbf16>, vector<256x128xbf16>, vector<16x128xf32> -> vector<16x128xf32>
    %22 = arith.addf %18, %21 : vector<16x128xf32>
    %23 = arith.truncf %17 : vector<16x256xf32> to vector<16x256xbf16>
    %c0_15 = arith.constant 0 : index
    %c0_16 = arith.constant 0 : index
    %24 = vector.load %arg7[%c0_15, %c0_16] : memref<16x384xbf16, #tpu.memory_space<vmem>>, vector<16x256xbf16>
    tpu.vector_store %arg7[%c0_15, %c0_16], %23 {strides = array<i32>} : memref<16x384xbf16, #tpu.memory_space<vmem>>, vector<16x256xbf16>,
    %25 = arith.truncf %22 : vector<16x128xf32> to vector<16x128xbf16>
    %c0_17 = arith.constant 0 : index
    %c256 = arith.constant 256 : index
    %26 = vector.load %arg7[%c0_17, %c256] : memref<16x384xbf16, #tpu.memory_space<vmem>>, vector<16x128xbf16>
    tpu.vector_store %arg7[%c0_17, %c256], %25 {strides = array<i32>} : memref<16x384xbf16, #tpu.memory_space<vmem>>, vector<16x128xbf16>,
    return
  }
  func.func @transform_0(%arg0: i32) -> (i32, i32) {
    %c0_i32 = arith.constant 0 : i32
    %c0_i32_0 = arith.constant 0 : i32
    return %arg0, %c0_i32 : i32, i32
  }
  func.func @transform_1(%arg0: i32) -> (i32, i32) {
    %c0_i32 = arith.constant 0 : i32
    %c0_i32_0 = arith.constant 0 : i32
    %c0_i32_1 = arith.constant 0 : i32
    return %c0_i32, %c0_i32_0 : i32, i32
  }
  func.func @transform_2(%arg0: i32) -> (i32, i32) {
    %c0_i32 = arith.constant 0 : i32
    %c0_i32_0 = arith.constant 0 : i32
    %c0_i32_1 = arith.constant 0 : i32
    return %c0_i32, %c0_i32_0 : i32, i32
  }
  func.func @transform_3(%arg0: i32) -> (i32, i32) {
    %c0_i32 = arith.constant 0 : i32
    %c0_i32_0 = arith.constant 0 : i32
    %c0_i32_1 = arith.constant 0 : i32
    return %c0_i32, %c0_i32_0 : i32, i32
  }
  func.func @transform_4(%arg0: i32) -> (i32, i32) {
    %c0_i32 = arith.constant 0 : i32
    %c0_i32_0 = arith.constant 0 : i32
    %c0_i32_1 = arith.constant 0 : i32
    return %c0_i32, %c0_i32_0 : i32, i32
  }
  func.func @transform_5(%arg0: i32) -> (i32, i32) {
    %c0_i32 = arith.constant 0 : i32
    %c0_i32_0 = arith.constant 0 : i32
    %c0_i32_1 = arith.constant 0 : i32
    return %c0_i32, %c0_i32_0 : i32, i32
  }
  func.func @transform_6(%arg0: i32) -> (i32, i32) {
    %c0_i32 = arith.constant 0 : i32
    %c0_i32_0 = arith.constant 0 : i32
    return %arg0, %c0_i32 : i32, i32
  }
}

</mosaic_0001>

<llo_original>
// kernel: scale_block_forward.1
$region0: #{scale_block_forward.1}
  #allocation0 [shape = 'u32[]', space=smem, size = 0x4, offset = 0x4, fixed_abs, tag = 'smem constant byte address 0x4 - core index']
  #allocation1 [shape = 'u32[144,128]{1,0:T(1,128)}', space=vmem, size = 0x12000, scoped, tag = 'internal scratch']
  %s0 = inlined_call_operand.vmem [shape: f32[16,192], index: 0, kind: input, shape index: {}]
  %s1 = inlined_call_operand.hbm [shape: bf16[192,512], index: 1, kind: input, shape index: {}]
  %s2 = inlined_call_operand.vmem [shape: f32[1,512], index: 2, kind: input, shape index: {}]
  %s3 = inlined_call_operand.hbm [shape: bf16[512,384], index: 3, kind: input, shape index: {}]
  %s4 = inlined_call_operand.vmem [shape: f32[1,384], index: 4, kind: input, shape index: {}]
  %s5 = inlined_call_operand.hbm [shape: bf16[256,128], index: 5, kind: input, shape index: {}]
  %s6 = inlined_call_operand.vmem [shape: bf16[16,384], index: 6, kind: output, shape index: {}]
  %s7 = sld [smem:[#allocation0]]
  $region46: #{scale_block_forward.1} parent=0
    _
  %s9 = ssub.s32 1, %s7
  %s10 = scalar_select 0, %s9, %s7
  $region1: #{scale_block_forward.1} parent=0
    #allocation2 [shape = 'u8[196608]{0}', space=vmem, size = 0x30000, scoped, tag = 'input window, operand 1, single buffered']
    #allocation3 [shape = 's32[1]{0}', space=sflag, size = 0x4, scoped, tag = 'scoped memory for scale_block_forward.1']
    #allocation4 [shape = 'u8[393216]{0}', space=vmem, size = 0x60000, scoped, tag = 'input window, operand 3, single buffered']
    #allocation5 [shape = 's32[1]{0}', space=sflag, size = 0x4, scoped, tag = 'scoped memory for scale_block_forward.1']
    #allocation6 [shape = 'u8[65536]{0}', space=vmem, size = 0x10000, scoped, tag = 'input window, operand 5, single buffered']
    %11 = vsyncpa [#allocation3], 0
    %12 = vsyncpa [#allocation5], 0
    // Predicated region
    $region2: #{scale_block_forward.1} parent=1 // pred_check
      _
    $region3: #{scale_block_forward.1} parent=1 // pred_check_branch
      %14 = sbr.rel (0) target = $region5
    $region4: #{scale_block_forward.1} parent=1 // pred_region
      _
    $region5: #{scale_block_forward.1} parent=1 // pred_fallthru
      _
    // Predicated region
    $region6: #{scale_block_forward.1} parent=1 // pred_check
      _
    $region7: #{scale_block_forward.1} parent=1 // pred_check_branch
      %16 = sbr.rel (0) target = $region9
    $region8: #{scale_block_forward.1} parent=1 // pred_region
      %s18 = ssub.s32 6144, 6144
      %19 = vsyncadd [#allocation3], %s18
      %s20 = sshll.u32 [#allocation2], 4
      %s21 = int_to_ptr.vmem [resolvable:$true] %s20
      %26 = dma.hbm_to_vmem [thread:$0]  %s1, 6144, %s21, [#allocation3], 256, 256, 16
    $region9: #{scale_block_forward.1} parent=1 // pred_fallthru
      _
    // Predicated region
    $region10: #{scale_block_forward.1} parent=1 // pred_check
      _
    $region11: #{scale_block_forward.1} parent=1 // pred_check_branch
      %28 = sbr.rel (0) target = $region13
    $region12: #{scale_block_forward.1} parent=1 // pred_region
      _
    $region13: #{scale_block_forward.1} parent=1 // pred_fallthru
      _
    // Predicated region
    $region14: #{scale_block_forward.1} parent=1 // pred_check
      _
    $region15: #{scale_block_forward.1} parent=1 // pred_check_branch
      %30 = sbr.rel (0) target = $region17
    $region16: #{scale_block_forward.1} parent=1 // pred_region
      %s32 = ssub.s32 12288, 12288
      %33 = vsyncadd [#allocation5], %s32
      %s34 = sshll.u32 [#allocation4], 4
      %s35 = int_to_ptr.vmem [resolvable:$true] %s34
      %40 = dma.hbm_to_vmem [thread:$0]  %s3, 12288, %s35, [#allocation5], 192, 192, 12
    $region17: #{scale_block_forward.1} parent=1 // pred_fallthru
      _
    // Predicated region
    $region18: #{scale_block_forward.1} parent=1 // pred_check
      _
    $region19: #{scale_block_forward.1} parent=1 // pred_check_branch
      %42 = sbr.rel (0) target = $region21
    $region20: #{scale_block_forward.1} parent=1 // pred_region
      _
    $region21: #{scale_block_forward.1} parent=1 // pred_fallthru
      _
    // Predicated region
    $region22: #{scale_block_forward.1} parent=1 // pred_check
      _
    $region23: #{scale_block_forward.1} parent=1 // pred_check_branch
      %44 = sbr.rel (0) target = $region25
    $region24: #{scale_block_forward.1} parent=1 // pred_region
      %s46 = ssub.s32 2048, 2048
      %47 = vsyncadd [#allocation5], %s46
      %s48 = sshll.u32 [#allocation6], 4
      %s49 = int_to_ptr.vmem [resolvable:$true] %s48
      %54 = dma.hbm_to_vmem [thread:$0]  %s5, 2048, %s49, [#allocation5], 64, 64, 4
    $region25: #{scale_block_forward.1} parent=1 // pred_fallthru
      _
    // Predicated region
    $region26: #{scale_block_forward.1} parent=1 // pred_check
      _
    $region27: #{scale_block_forward.1} parent=1 // pred_check_branch
      %56 = sbr.rel (0) target = $region29
    $region28: #{scale_block_forward.1} parent=1 // pred_region
      %57 = dma.done [#allocation3], 6144
    $region29: #{scale_block_forward.1} parent=1 // pred_fallthru
      _
    // Predicated region
    $region30: #{scale_block_forward.1} parent=1 // pred_check
      _
    $region31: #{scale_block_forward.1} parent=1 // pred_check_branch
      %59 = sbr.rel (0) target = $region33
    $region32: #{scale_block_forward.1} parent=1 // pred_region
      %60 = dma.done [#allocation5], 12288
    $region33: #{scale_block_forward.1} parent=1 // pred_fallthru
      _
    // Predicated region
    $region34: #{scale_block_forward.1} parent=1 // pred_check
      _
    $region35: #{scale_block_forward.1} parent=1 // pred_check_branch
      %62 = sbr.rel (0) target = $region37
    $region36: #{scale_block_forward.1} parent=1 // pred_region
      %63 = dma.done [#allocation5], 2048
    $region37: #{scale_block_forward.1} parent=1 // pred_fallthru
      _
    %v65 = vld [vmem:[%s0] sm:$0xff]
    %v66 = vld [vmem:[%s0 + $0x8] sm:$0xff]
    %v67 = vld [vmem:[%s0 + $0x10] sm:$0xff]
    %v68 = vld [vmem:[%s0 + $0x18] sm:$0xff]
    %v69 = vpack.c.bf16 %v67, %v65
    %v70 = vpack.c.bf16 %v68, %v66
    %v71 = vld [vmem:[#allocation2] sm:$0xff]
    %v72 = vld [vmem:[#allocation2 + $0x8] sm:$0xff]
    %v73 = vld [vmem:[#allocation2 + $0x10] sm:$0xff]
    %v74 = vld [vmem:[#allocation2 + $0x18] sm:$0xff]
    %v75 = vld [vmem:[#allocation2 + $0x20] sm:$0xff]
    %v76 = vld [vmem:[#allocation2 + $0x28] sm:$0xff]
    %v77 = vld [vmem:[#allocation2 + $0x30] sm:$0xff]
    %v78 = vld [vmem:[#allocation2 + $0x38] sm:$0xff]
    %v79 = vld [vmem:[#allocation2 + $0x40] sm:$0xff]
    %v80 = vld [vmem:[#allocation2 + $0x48] sm:$0xff]
    %v81 = vld [vmem:[#allocation2 + $0x50] sm:$0xff]
    %v82 = vld [vmem:[#allocation2 + $0x58] sm:$0xff]
    %v83 = vld [vmem:[#allocation2 + $0x60] sm:$0xff]
    %v84 = vld [vmem:[#allocation2 + $0x68] sm:$0xff]
    %v85 = vld [vmem:[#allocation2 + $0x70] sm:$0xff]
    %v86 = vld [vmem:[#allocation2 + $0x78] sm:$0xff]
    %v87 = vld [vmem:[#allocation2 + $0x80] sm:$0xff]
    %v88 = vld [vmem:[#allocation2 + $0x88] sm:$0xff]
    %v89 = vld [vmem:[#allocation2 + $0x90] sm:$0xff]
    %v90 = vld [vmem:[#allocation2 + $0x98] sm:$0xff]
    %v91 = vld [vmem:[#allocation2 + $0xa0] sm:$0xff]
    %v92 = vld [vmem:[#allocation2 + $0xa8] sm:$0xff]
    %v93 = vld [vmem:[#allocation2 + $0xb0] sm:$0xff]
    %v94 = vld [vmem:[#allocation2 + $0xb8] sm:$0xff]
    %v95 = vld [vmem:[#allocation2 + $0xc0] sm:$0xff]
    %v96 = vld [vmem:[#allocation2 + $0xc8] sm:$0xff]
    %v97 = vld [vmem:[#allocation2 + $0xd0] sm:$0xff]
    %v98 = vld [vmem:[#allocation2 + $0xd8] sm:$0xff]
    %v99 = vld [vmem:[#allocation2 + $0xe0] sm:$0xff]
    %v100 = vld [vmem:[#allocation2 + $0xe8] sm:$0xff]
    %v101 = vld [vmem:[#allocation2 + $0xf0] sm:$0xff]
    %v102 = vld [vmem:[#allocation2 + $0xf8] sm:$0xff]
    %v103 = vld [vmem:[#allocation2 + $0x100] sm:$0xff]
    %v104 = vld [vmem:[#allocation2 + $0x108] sm:$0xff]
    %v105 = vld [vmem:[#allocation2 + $0x110] sm:$0xff]
    %v106 = vld [vmem:[#allocation2 + $0x118] sm:$0xff]
    %v107 = vld [vmem:[#allocation2 + $0x120] sm:$0xff]
    %v108 = vld [vmem:[#allocation2 + $0x128] sm:$0xff]
    %v109 = vld [vmem:[#allocation2 + $0x130] sm:$0xff]
    %v110 = vld [vmem:[#allocation2 + $0x138] sm:$0xff]
    %v111 = vld [vmem:[#allocation2 + $0x140] sm:$0xff]
    %v112 = vld [vmem:[#allocation2 + $0x148] sm:$0xff]
    %v113 = vld [vmem:[#allocation2 + $0x150] sm:$0xff]
    %v114 = vld [vmem:[#allocation2 + $0x158] sm:$0xff]
    %v115 = vld [vmem:[#allocation2 + $0x160] sm:$0xff]
    %v116 = vld [vmem:[#allocation2 + $0x168] sm:$0xff]
    %v117 = vld [vmem:[#allocation2 + $0x170] sm:$0xff]
    %v118 = vld [vmem:[#allocation2 + $0x178] sm:$0xff]
    %v119 = vld [vmem:[%s2] sm:$0xf]
    %v121 = vlaneseq
    %v122 = vshrl.u32 %v121, 7
    %v123 = vsub.s32 0, %v122
    %v124 = vrot.slane %v119, %v123
    %v125 = vlaneseq
    %v126 = vshrl.u32 %v125, 7
    %v127 = vsub.s32 1, %v126
    %v128 = vrot.slane %v119, %v127
    %v129 = vlaneseq
    %v130 = vshrl.u32 %v129, 7
    %v131 = vsub.s32 2, %v130
    %v132 = vrot.slane %v119, %v131
    %v133 = vlaneseq
    %v134 = vshrl.u32 %v133, 7
    %v135 = vsub.s32 3, %v134
    %v136 = vrot.slane %v119, %v135
    %v189 = vunpack.c.l.b16 %v71
    %v190 = vunpack.c.h.b16 %v71
    %v191 = vunpack.c.l.b16 %v72
    %v192 = vunpack.c.h.b16 %v72
    %v193 = vunpack.c.l.b16 %v73
    %v194 = vunpack.c.h.b16 %v73
    %v195 = vunpack.c.l.b16 %v74
    %v196 = vunpack.c.h.b16 %v74
    %v197 = vunpack.c.l.b16 %v75
    %v198 = vunpack.c.h.b16 %v75
    %v199 = vunpack.c.l.b16 %v76
    %v200 = vunpack.c.h.b16 %v76
    %v201 = vunpack.c.l.b16 %v77
    %v202 = vunpack.c.h.b16 %v77
    %v203 = vunpack.c.l.b16 %v78
    %v204 = vunpack.c.h.b16 %v78
    %v205 = vunpack.c.l.b16 %v79
    %v206 = vunpack.c.h.b16 %v79
    %v207 = vunpack.c.l.b16 %v80
    %v208 = vunpack.c.h.b16 %v80
    %v209 = vunpack.c.l.b16 %v81
    %v210 = vunpack.c.h.b16 %v81
    %v211 = vunpack.c.l.b16 %v82
    %v212 = vunpack.c.h.b16 %v82
    %v213 = vunpack.c.l.b16 %v83
    %v214 = vunpack.c.h.b16 %v83
    %v215 = vunpack.c.l.b16 %v84
    %v216 = vunpack.c.h.b16 %v84
    %v217 = vunpack.c.l.b16 %v85
    %v218 = vunpack.c.h.b16 %v85
    %v219 = vunpack.c.l.b16 %v86
    %v220 = vunpack.c.h.b16 %v86
    %v221 = vunpack.c.l.b16 %v87
    %v222 = vunpack.c.h.b16 %v87
    %v223 = vunpack.c.l.b16 %v88
    %v224 = vunpack.c.h.b16 %v88
    %v225 = vunpack.c.l.b16 %v89
    %v226 = vunpack.c.h.b16 %v89
    %v227 = vunpack.c.l.b16 %v90
    %v228 = vunpack.c.h.b16 %v90
    %v229 = vunpack.c.l.b16 %v91
    %v230 = vunpack.c.h.b16 %v91
    %v231 = vunpack.c.l.b16 %v92
    %v232 = vunpack.c.h.b16 %v92
    %v233 = vunpack.c.l.b16 %v93
    %v234 = vunpack.c.h.b16 %v93
    %v235 = vunpack.c.l.b16 %v94
    %v236 = vunpack.c.h.b16 %v94
    %v237 = vunpack.c.l.b16 %v95
    %v238 = vunpack.c.h.b16 %v95
    %v239 = vunpack.c.l.b16 %v96
    %v240 = vunpack.c.h.b16 %v96
    %v241 = vunpack.c.l.b16 %v97
    %v242 = vunpack.c.h.b16 %v97
    %v243 = vunpack.c.l.b16 %v98
    %v244 = vunpack.c.h.b16 %v98
    %v245 = vunpack.c.l.b16 %v99
    %v246 = vunpack.c.h.b16 %v99
    %v247 = vunpack.c.l.b16 %v100
    %v248 = vunpack.c.h.b16 %v100
    %v249 = vunpack.c.l.b16 %v101
    %v250 = vunpack.c.h.b16 %v101
    %v251 = vunpack.c.l.b16 %v102
    %v252 = vunpack.c.h.b16 %v102
    %v253 = vunpack.c.l.b16 %v103
    %v254 = vunpack.c.h.b16 %v103
    %v255 = vunpack.c.l.b16 %v104
    %v256 = vunpack.c.h.b16 %v104
    %v257 = vunpack.c.l.b16 %v105
    %v258 = vunpack.c.h.b16 %v105
    %v259 = vunpack.c.l.b16 %v106
    %v260 = vunpack.c.h.b16 %v106
    %v261 = vunpack.c.l.b16 %v107
    %v262 = vunpack.c.h.b16 %v107
    %v263 = vunpack.c.l.b16 %v108
    %v264 = vunpack.c.h.b16 %v108
    %v265 = vunpack.c.l.b16 %v109
    %v266 = vunpack.c.h.b16 %v109
    %v267 = vunpack.c.l.b16 %v110
    %v268 = vunpack.c.h.b16 %v110
    %v269 = vunpack.c.l.b16 %v111
    %v270 = vunpack.c.h.b16 %v111
    %v271 = vunpack.c.l.b16 %v112
    %v272 = vunpack.c.h.b16 %v112
    %v273 = vunpack.c.l.b16 %v113
    %v274 = vunpack.c.h.b16 %v113
    %v275 = vunpack.c.l.b16 %v114
    %v276 = vunpack.c.h.b16 %v114
    %v277 = vunpack.c.l.b16 %v115
    %v278 = vunpack.c.h.b16 %v115
    %v279 = vunpack.c.l.b16 %v116
    %v280 = vunpack.c.h.b16 %v116
    %v281 = vunpack.c.l.b16 %v117
    %v282 = vunpack.c.h.b16 %v117
    %v283 = vunpack.c.l.b16 %v118
    %v284 = vunpack.c.h.b16 %v118
    %v285 = vpack.c.b16 %v193, %v189
    %v286 = vpack.c.b16 %v194, %v190
    %v287 = vpack.c.b16 %v195, %v191
    %v288 = vpack.c.b16 %v196, %v192
    %v289 = vpack.c.b16 %v201, %v197
    %v290 = vpack.c.b16 %v202, %v198
    %v291 = vpack.c.b16 %v203, %v199
    %v292 = vpack.c.b16 %v204, %v200
    %v293 = vpack.c.b16 %v209, %v205
    %v294 = vpack.c.b16 %v210, %v206
    %v295 = vpack.c.b16 %v211, %v207
    %v296 = vpack.c.b16 %v212, %v208
    %v297 = vpack.c.b16 %v217, %v213
    %v298 = vpack.c.b16 %v218, %v214
    %v299 = vpack.c.b16 %v219, %v215
    %v300 = vpack.c.b16 %v220, %v216
    %v301 = vpack.c.b16 %v225, %v221
    %v302 = vpack.c.b16 %v226, %v222
    %v303 = vpack.c.b16 %v227, %v223
    %v304 = vpack.c.b16 %v228, %v224
    %v305 = vpack.c.b16 %v233, %v229
    %v306 = vpack.c.b16 %v234, %v230
    %v307 = vpack.c.b16 %v235, %v231
    %v308 = vpack.c.b16 %v236, %v232
    %v309 = vpack.c.b16 %v241, %v237
    %v310 = vpack.c.b16 %v242, %v238
    %v311 = vpack.c.b16 %v243, %v239
    %v312 = vpack.c.b16 %v244, %v240
    %v313 = vpack.c.b16 %v249, %v245
    %v314 = vpack.c.b16 %v250, %v246
    %v315 = vpack.c.b16 %v251, %v247
    %v316 = vpack.c.b16 %v252, %v248
    %v317 = vpack.c.b16 %v257, %v253
    %v318 = vpack.c.b16 %v258, %v254
    %v319 = vpack.c.b16 %v259, %v255
    %v320 = vpack.c.b16 %v260, %v256
    %v321 = vpack.c.b16 %v265, %v261
    %v322 = vpack.c.b16 %v266, %v262
    %v323 = vpack.c.b16 %v267, %v263
    %v324 = vpack.c.b16 %v268, %v264
    %v325 = vpack.c.b16 %v273, %v269
    %v326 = vpack.c.b16 %v274, %v270
    %v327 = vpack.c.b16 %v275, %v271
    %v328 = vpack.c.b16 %v276, %v272
    %v329 = vpack.c.b16 %v281, %v277
    %v330 = vpack.c.b16 %v282, %v278
    %v331 = vpack.c.b16 %v283, %v279
    %v332 = vpack.c.b16 %v284, %v280
    %vm381 = vcmask 523264
    %v383 = vsel %vm381, %v70, 0
    %385 = vmatprep.subr.bf16.mxu0 %v286
    %386 = vmatpush1.bf16.msra.mxu0 %v285
    %387 = vmatprep.subr.bf16.mxu0 %v290
    %388 = vmatpush1.bf16.msra.mxu0 %v289
    %389 = vmatprep.subr.bf16.mxu0 %v294
    %390 = vmatpush1.bf16.msra.mxu0 %v293
    %391 = vmatprep.subr.bf16.mxu0 %v298
    %392 = vmatpush1.bf16.msra.mxu0 %v297
    %393 = vmatprep.subr.bf16.mxu0 %v302
    %394 = vmatpush1.bf16.msra.mxu0 %v301
    %395 = vmatprep.subr.bf16.mxu0 %v306
    %396 = vmatpush1.bf16.msra.mxu0 %v305
    %397 = vmatprep.subr.bf16.mxu0 %v310
    %398 = vmatpush1.bf16.msra.mxu0 %v309
    %399 = vmatprep.subr.bf16.mxu0 %v314
    %400 = vmatpush1.bf16.msra.mxu0 %v313
    %401 = vmatprep.subr.bf16.mxu0 %v318
    %402 = vmatpush1.bf16.msra.mxu0 %v317
    %403 = vmatprep.subr.bf16.mxu0 %v322
    %404 = vmatpush1.bf16.msra.mxu0 %v321
    %405 = vmatprep.subr.bf16.mxu0 %v326
    %406 = vmatpush1.bf16.msra.mxu0 %v325
    %407 = vmatprep.subr.bf16.mxu0 %v330
    %408 = vmatpush1.bf16.msra.mxu0 %v329
    %409 = vmatprep.subr.bf16.mxu0 0
    %410 = vmatpush1.bf16.msra.mxu0 0
    %411 = vmatprep.subr.bf16.mxu0 0
    %412 = vmatpush1.bf16.msra.mxu0 0
    %413 = vmatprep.subr.bf16.mxu0 0
    %414 = vmatpush1.bf16.msra.mxu0 0
    %415 = vmatprep.subr.bf16.mxu0 0
    %416 = vmatpush1.bf16.msra.mxu0 0
    %417 = vmatprep.mubr.bf16.mxu0 %v383
    %418 = vmatmul.mubr.bf16.gmra.mrb[0].mxu0 %v69
    %v419 = vpop.f32.mrb[0].mxu0
    %v420 = vadd.f32 %v124, %v419
    %v421 = vpop.f32.mrb[0].mxu0
    %v422 = vadd.f32 %v128, %v421
    %v423 = vpop.f32.mrb[0].mxu0
    %v424 = vadd.f32 %v124, %v423
    %v425 = vpop.f32.mrb[0].mxu0
    %v426 = vadd.f32 %v128, %v425
    %427 = vdwg.mxu0
    %428 = vmatprep.subr.bf16.mxu0 %v288
    %429 = vmatpush1.bf16.msra.mxu0 %v287
    %430 = vmatprep.subr.bf16.mxu0 %v292
    %431 = vmatpush1.bf16.msra.mxu0 %v291
    %432 = vmatprep.subr.bf16.mxu0 %v296
    %433 = vmatpush1.bf16.msra.mxu0 %v295
    %434 = vmatprep.subr.bf16.mxu0 %v300
    %435 = vmatpush1.bf16.msra.mxu0 %v299
    %436 = vmatprep.subr.bf16.mxu0 %v304
    %437 = vmatpush1.bf16.msra.mxu0 %v303
    %438 = vmatprep.subr.bf16.mxu0 %v308
    %439 = vmatpush1.bf16.msra.mxu0 %v307
    %440 = vmatprep.subr.bf16.mxu0 %v312
    %441 = vmatpush1.bf16.msra.mxu0 %v311
    %442 = vmatprep.subr.bf16.mxu0 %v316
    %443 = vmatpush1.bf16.msra.mxu0 %v315
    %444 = vmatprep.subr.bf16.mxu0 %v320
    %445 = vmatpush1.bf16.msra.mxu0 %v319
    %446 = vmatprep.subr.bf16.mxu0 %v324
    %447 = vmatpush1.bf16.msra.mxu0 %v323
    %448 = vmatprep.subr.bf16.mxu0 %v328
    %449 = vmatpush1.bf16.msra.mxu0 %v327
    %450 = vmatprep.subr.bf16.mxu0 %v332
    %451 = vmatpush1.bf16.msra.mxu0 %v331
    %452 = vmatprep.subr.bf16.mxu0 0
    %453 = vmatpush1.bf16.msra.mxu0 0
    %454 = vmatprep.subr.bf16.mxu0 0
    %455 = vmatpush1.bf16.msra.mxu0 0
    %456 = vmatprep.subr.bf16.mxu0 0
    %457 = vmatpush1.bf16.msra.mxu0 0
    %458 = vmatprep.subr.bf16.mxu0 0
    %459 = vmatpush1.bf16.msra.mxu0 0
    %460 = vmatprep.mubr.bf16.mxu0 %v383
    %461 = vmatmul.mubr.bf16.gmra.mrb[0].mxu0 %v69
    %v462 = vpop.f32.mrb[0].mxu0
    %v463 = vadd.f32 %v132, %v462
    %v464 = vpop.f32.mrb[0].mxu0
    %v465 = vadd.f32 %v136, %v464
    %v466 = vpop.f32.mrb[0].mxu0
    %v467 = vadd.f32 %v132, %v466
    %v468 = vpop.f32.mrb[0].mxu0
    %v469 = vadd.f32 %v136, %v468
    %470 = vdwg.mxu0
    %v471 = vmax.f32 %v420, 0.0
    %v472 = vmax.f32 %v422, 0.0
    %v473 = vmax.f32 %v463, 0.0
    %v474 = vmax.f32 %v465, 0.0
    %v475 = vmax.f32 %v424, 0.0
    %v476 = vmax.f32 %v426, 0.0
    %v477 = vmax.f32 %v467, 0.0
    %v478 = vmax.f32 %v469, 0.0
    %v479 = vpack.c.bf16 %v475, %v471
    %v480 = vpack.c.bf16 %v476, %v472
    %v481 = vpack.c.bf16 %v477, %v473
    %v482 = vpack.c.bf16 %v478, %v474
    %v483 = vld [vmem:[#allocation4] sm:$0xff]
    %v484 = vld [vmem:[#allocation4 + $0x8] sm:$0xf]
    %v485 = vld [vmem:[#allocation4 + $0xc] sm:$0xff]
    %v486 = vld [vmem:[#allocation4 + $0x14] sm:$0xf]
    %v487 = vld [vmem:[#allocation4 + $0x18] sm:$0xff]
    %v488 = vld [vmem:[#allocation4 + $0x20] sm:$0xf]
    %v489 = vld [vmem:[#allocation4 + $0x24] sm:$0xff]
    %v490 = vld [vmem:[#allocation4 + $0x2c] sm:$0xf]
    %v491 = vld [vmem:[#allocation4 + $0x30] sm:$0xff]
    %v492 = vld [vmem:[#allocation4 + $0x38] sm:$0xf]
    %v493 = vld [vmem:[#allocation4 + $0x3c] sm:$0xff]
    %v494 = vld [vmem:[#allocation4 + $0x44] sm:$0xf]
    %v495 = vld [vmem:[#allocation4 + $0x48] sm:$0xff]
    %v496 = vld [vmem:[#allocation4 + $0x50] sm:$0xf]
    %v497 = vld [vmem:[#allocation4 + $0x54] sm:$0xff]
    %v498 = vld [vmem:[#allocation4 + $0x5c] sm:$0xf]
    %v499 = vld [vmem:[#allocation4 + $0x60] sm:$0xff]
    %v500 = vld [vmem:[#allocation4 + $0x68] sm:$0xf]
    %v501 = vld [vmem:[#allocation4 + $0x6c] sm:$0xff]
    %v502 = vld [vmem:[#allocation4 + $0x74] sm:$0xf]
    %v503 = vld [vmem:[#allocation4 + $0x78] sm:$0xff]
    %v504 = vld [vmem:[#allocation4 + $0x80] sm:$0xf]
    %v505 = vld [vmem:[#allocation4 + $0x84] sm:$0xff]
    %v506 = vld [vmem:[#allocation4 + $0x8c] sm:$0xf]
    %v507 = vld [vmem:[#allocation4 + $0x90] sm:$0xff]
    %v508 = vld [vmem:[#allocation4 + $0x98] sm:$0xf]
    %v509 = vld [vmem:[#allocation4 + $0x9c] sm:$0xff]
    %v510 = vld [vmem:[#allocation4 + $0xa4] sm:$0xf]
    %v511 = vld [vmem:[#allocation4 + $0xa8] sm:$0xff]
    %v512 = vld [vmem:[#allocation4 + $0xb0] sm:$0xf]
    %v513 = vld [vmem:[#allocation4 + $0xb4] sm:$0xff]
    %v514 = vld [vmem:[#allocation4 + $0xbc] sm:$0xf]
    %v515 = vld [vmem:[#allocation4 + $0xc0] sm:$0xff]
    %v516 = vld [vmem:[#allocation4 + $0xc8] sm:$0xf]
    %v517 = vld [vmem:[#allocation4 + $0xcc] sm:$0xff]
    %v518 = vld [vmem:[#allocation4 + $0xd4] sm:$0xf]
    %v519 = vld [vmem:[#allocation4 + $0xd8] sm:$0xff]
    %v520 = vld [vmem:[#allocation4 + $0xe0] sm:$0xf]
    %v521 = vld [vmem:[#allocation4 + $0xe4] sm:$0xff]
    %v522 = vld [vmem:[#allocation4 + $0xec] sm:$0xf]
    %v523 = vld [vmem:[#allocation4 + $0xf0] sm:$0xff]
    %v524 = vld [vmem:[#allocation4 + $0xf8] sm:$0xf]
    %v525 = vld [vmem:[#allocation4 + $0xfc] sm:$0xff]
    %v526 = vld [vmem:[#allocation4 + $0x104] sm:$0xf]
    %v527 = vld [vmem:[#allocation4 + $0x108] sm:$0xff]
    %v528 = vld [vmem:[#allocation4 + $0x110] sm:$0xf]
    %v529 = vld [vmem:[#allocation4 + $0x114] sm:$0xff]
    %v530 = vld [vmem:[#allocation4 + $0x11c] sm:$0xf]
    %v531 = vld [vmem:[#allocation4 + $0x120] sm:$0xff]
    %v532 = vld [vmem:[#allocation4 + $0x128] sm:$0xf]
    %v533 = vld [vmem:[#allocation4 + $0x12c] sm:$0xff]
    %v534 = vld [vmem:[#allocation4 + $0x134] sm:$0xf]
    %v535 = vld [vmem:[#allocation4 + $0x138] sm:$0xff]
    %v536 = vld [vmem:[#allocation4 + $0x140] sm:$0xf]
    %v537 = vld [vmem:[#allocation4 + $0x144] sm:$0xff]
    %v538 = vld [vmem:[#allocation4 + $0x14c] sm:$0xf]
    %v539 = vld [vmem:[#allocation4 + $0x150] sm:$0xff]
    %v540 = vld [vmem:[#allocation4 + $0x158] sm:$0xf]
    %v541 = vld [vmem:[#allocation4 + $0x15c] sm:$0xff]
    %v542 = vld [vmem:[#allocation4 + $0x164] sm:$0xf]
    %v543 = vld [vmem:[#allocation4 + $0x168] sm:$0xff]
    %v544 = vld [vmem:[#allocation4 + $0x170] sm:$0xf]
    %v545 = vld [vmem:[#allocation4 + $0x174] sm:$0xff]
    %v546 = vld [vmem:[#allocation4 + $0x17c] sm:$0xf]
    %v547 = vld [vmem:[#allocation4 + $0x180] sm:$0xff]
    %v548 = vld [vmem:[#allocation4 + $0x188] sm:$0xf]
    %v549 = vld [vmem:[#allocation4 + $0x18c] sm:$0xff]
    %v550 = vld [vmem:[#allocation4 + $0x194] sm:$0xf]
    %v551 = vld [vmem:[#allocation4 + $0x198] sm:$0xff]
    %v552 = vld [vmem:[#allocation4 + $0x1a0] sm:$0xf]
    %v553 = vld [vmem:[#allocation4 + $0x1a4] sm:$0xff]
    %v554 = vld [vmem:[#allocation4 + $0x1ac] sm:$0xf]
    %v555 = vld [vmem:[#allocation4 + $0x1b0] sm:$0xff]
    %v556 = vld [vmem:[#allocation4 + $0x1b8] sm:$0xf]
    %v557 = vld [vmem:[#allocation4 + $0x1bc] sm:$0xff]
    %v558 = vld [vmem:[#allocation4 + $0x1c4] sm:$0xf]
    %v559 = vld [vmem:[#allocation4 + $0x1c8] sm:$0xff]
    %v560 = vld [vmem:[#allocation4 + $0x1d0] sm:$0xf]
    %v561 = vld [vmem:[#allocation4 + $0x1d4] sm:$0xff]
    %v562 = vld [vmem:[#allocation4 + $0x1dc] sm:$0xf]
    %v563 = vld [vmem:[#allocation4 + $0x1e0] sm:$0xff]
    %v564 = vld [vmem:[#allocation4 + $0x1e8] sm:$0xf]
    %v565 = vld [vmem:[#allocation4 + $0x1ec] sm:$0xff]
    %v566 = vld [vmem:[#allocation4 + $0x1f4] sm:$0xf]
    %v567 = vld [vmem:[#allocation4 + $0x1f8] sm:$0xff]
    %v568 = vld [vmem:[#allocation4 + $0x200] sm:$0xf]
    %v569 = vld [vmem:[#allocation4 + $0x204] sm:$0xff]
    %v570 = vld [vmem:[#allocation4 + $0x20c] sm:$0xf]
    %v571 = vld [vmem:[#allocation4 + $0x210] sm:$0xff]
    %v572 = vld [vmem:[#allocation4 + $0x218] sm:$0xf]
    %v573 = vld [vmem:[#allocation4 + $0x21c] sm:$0xff]
    %v574 = vld [vmem:[#allocation4 + $0x224] sm:$0xf]
    %v575 = vld [vmem:[#allocation4 + $0x228] sm:$0xff]
    %v576 = vld [vmem:[#allocation4 + $0x230] sm:$0xf]
    %v577 = vld [vmem:[#allocation4 + $0x234] sm:$0xff]
    %v578 = vld [vmem:[#allocation4 + $0x23c] sm:$0xf]
    %v579 = vld [vmem:[#allocation4 + $0x240] sm:$0xff]
    %v580 = vld [vmem:[#allocation4 + $0x248] sm:$0xf]
    %v581 = vld [vmem:[#allocation4 + $0x24c] sm:$0xff]
    %v582 = vld [vmem:[#allocation4 + $0x254] sm:$0xf]
    %v583 = vld [vmem:[#allocation4 + $0x258] sm:$0xff]
    %v584 = vld [vmem:[#allocation4 + $0x260] sm:$0xf]
    %v585 = vld [vmem:[#allocation4 + $0x264] sm:$0xff]
    %v586 = vld [vmem:[#allocation4 + $0x26c] sm:$0xf]
    %v587 = vld [vmem:[#allocation4 + $0x270] sm:$0xff]
    %v588 = vld [vmem:[#allocation4 + $0x278] sm:$0xf]
    %v589 = vld [vmem:[#allocation4 + $0x27c] sm:$0xff]
    %v590 = vld [vmem:[#allocation4 + $0x284] sm:$0xf]
    %v591 = vld [vmem:[#allocation4 + $0x288] sm:$0xff]
    %v592 = vld [vmem:[#allocation4 + $0x290] sm:$0xf]
    %v593 = vld [vmem:[#allocation4 + $0x294] sm:$0xff]
    %v594 = vld [vmem:[#allocation4 + $0x29c] sm:$0xf]
    %v595 = vld [vmem:[#allocation4 + $0x2a0] sm:$0xff]
    %v596 = vld [vmem:[#allocation4 + $0x2a8] sm:$0xf]
    %v597 = vld [vmem:[#allocation4 + $0x2ac] sm:$0xff]
    %v598 = vld [vmem:[#allocation4 + $0x2b4] sm:$0xf]
    %v599 = vld [vmem:[#allocation4 + $0x2b8] sm:$0xff]
    %v600 = vld [vmem:[#allocation4 + $0x2c0] sm:$0xf]
    %v601 = vld [vmem:[#allocation4 + $0x2c4] sm:$0xff]
    %v602 = vld [vmem:[#allocation4 + $0x2cc] sm:$0xf]
    %v603 = vld [vmem:[#allocation4 + $0x2d0] sm:$0xff]
    %v604 = vld [vmem:[#allocation4 + $0x2d8] sm:$0xf]
    %v605 = vld [vmem:[#allocation4 + $0x2dc] sm:$0xff]
    %v606 = vld [vmem:[#allocation4 + $0x2e4] sm:$0xf]
    %v607 = vld [vmem:[#allocation4 + $0x2e8] sm:$0xff]
    %v608 = vld [vmem:[#allocation4 + $0x2f0] sm:$0xf]
    %v609 = vld [vmem:[#allocation4 + $0x2f4] sm:$0xff]
    %v610 = vld [vmem:[#allocation4 + $0x2fc] sm:$0xf]
    %v611 = vld [vmem:[%s4] sm:$0x7]
    %v613 = vlaneseq
    %v614 = vshrl.u32 %v613, 7
    %v615 = vsub.s32 0, %v614
    %v616 = vrot.slane %v611, %v615
    %v617 = vlaneseq
    %v618 = vshrl.u32 %v617, 7
    %v619 = vsub.s32 1, %v618
    %v620 = vrot.slane %v611, %v619
    %v621 = vlaneseq
    %v622 = vshrl.u32 %v621, 7
    %v623 = vsub.s32 2, %v622
    %v624 = vrot.slane %v611, %v623
    %v756 = vunpack.c.l.b16 %v483
    %v757 = vunpack.c.h.b16 %v483
    %v758 = vunpack.c.l.b16 %v484
    %v759 = vunpack.c.l.b16 %v485
    %v760 = vunpack.c.h.b16 %v485
    %v761 = vunpack.c.l.b16 %v486
    %v762 = vunpack.c.l.b16 %v487
    %v763 = vunpack.c.h.b16 %v487
    %v764 = vunpack.c.l.b16 %v488
    %v765 = vunpack.c.l.b16 %v489
    %v766 = vunpack.c.h.b16 %v489
    %v767 = vunpack.c.l.b16 %v490
    %v768 = vunpack.c.l.b16 %v491
    %v769 = vunpack.c.h.b16 %v491
    %v770 = vunpack.c.l.b16 %v492
    %v771 = vunpack.c.l.b16 %v493
    %v772 = vunpack.c.h.b16 %v493
    %v773 = vunpack.c.l.b16 %v494
    %v774 = vunpack.c.l.b16 %v495
    %v775 = vunpack.c.h.b16 %v495
    %v776 = vunpack.c.l.b16 %v496
    %v777 = vunpack.c.l.b16 %v497
    %v778 = vunpack.c.h.b16 %v497
    %v779 = vunpack.c.l.b16 %v498
    %v780 = vunpack.c.l.b16 %v499
    %v781 = vunpack.c.h.b16 %v499
    %v782 = vunpack.c.l.b16 %v500
    %v783 = vunpack.c.l.b16 %v501
    %v784 = vunpack.c.h.b16 %v501
    %v785 = vunpack.c.l.b16 %v502
    %v786 = vunpack.c.l.b16 %v503
    %v787 = vunpack.c.h.b16 %v503
    %v788 = vunpack.c.l.b16 %v504
    %v789 = vunpack.c.l.b16 %v505
    %v790 = vunpack.c.h.b16 %v505
    %v791 = vunpack.c.l.b16 %v506
    %v792 = vunpack.c.l.b16 %v507
    %v793 = vunpack.c.h.b16 %v507
    %v794 = vunpack.c.l.b16 %v508
    %v795 = vunpack.c.l.b16 %v509
    %v796 = vunpack.c.h.b16 %v509
    %v797 = vunpack.c.l.b16 %v510
    %v798 = vunpack.c.l.b16 %v511
    %v799 = vunpack.c.h.b16 %v511
    %v800 = vunpack.c.l.b16 %v512
    %v801 = vunpack.c.l.b16 %v513
    %v802 = vunpack.c.h.b16 %v513
    %v803 = vunpack.c.l.b16 %v514
    %v804 = vunpack.c.l.b16 %v515
    %v805 = vunpack.c.h.b16 %v515
    %v806 = vunpack.c.l.b16 %v516
    %v807 = vunpack.c.l.b16 %v517
    %v808 = vunpack.c.h.b16 %v517
    %v809 = vunpack.c.l.b16 %v518
    %v810 = vunpack.c.l.b16 %v519
    %v811 = vunpack.c.h.b16 %v519
    %v812 = vunpack.c.l.b16 %v520
    %v813 = vunpack.c.l.b16 %v521
    %v814 = vunpack.c.h.b16 %v521
    %v815 = vunpack.c.l.b16 %v522
    %v816 = vunpack.c.l.b16 %v523
    %v817 = vunpack.c.h.b16 %v523
    %v818 = vunpack.c.l.b16 %v524
    %v819 = vunpack.c.l.b16 %v525
    %v820 = vunpack.c.h.b16 %v525
    %v821 = vunpack.c.l.b16 %v526
    %v822 = vunpack.c.l.b16 %v527
    %v823 = vunpack.c.h.b16 %v527
    %v824 = vunpack.c.l.b16 %v528
    %v825 = vunpack.c.l.b16 %v529
    %v826 = vunpack.c.h.b16 %v529
    %v827 = vunpack.c.l.b16 %v530
    %v828 = vunpack.c.l.b16 %v531
    %v829 = vunpack.c.h.b16 %v531
    %v830 = vunpack.c.l.b16 %v532
    %v831 = vunpack.c.l.b16 %v533
    %v832 = vunpack.c.h.b16 %v533
    %v833 = vunpack.c.l.b16 %v534
    %v834 = vunpack.c.l.b16 %v535
    %v835 = vunpack.c.h.b16 %v535
    %v836 = vunpack.c.l.b16 %v536
    %v837 = vunpack.c.l.b16 %v537
    %v838 = vunpack.c.h.b16 %v537
    %v839 = vunpack.c.l.b16 %v538
    %v840 = vunpack.c.l.b16 %v539
    %v841 = vunpack.c.h.b16 %v539
    %v842 = vunpack.c.l.b16 %v540
    %v843 = vunpack.c.l.b16 %v541
    %v844 = vunpack.c.h.b16 %v541
    %v845 = vunpack.c.l.b16 %v542
    %v846 = vunpack.c.l.b16 %v543
    %v847 = vunpack.c.h.b16 %v543
    %v848 = vunpack.c.l.b16 %v544
    %v849 = vunpack.c.l.b16 %v545
    %v850 = vunpack.c.h.b16 %v545
    %v851 = vunpack.c.l.b16 %v546
    %v852 = vunpack.c.l.b16 %v547
    %v853 = vunpack.c.h.b16 %v547
    %v854 = vunpack.c.l.b16 %v548
    %v855 = vunpack.c.l.b16 %v549
    %v856 = vunpack.c.h.b16 %v549
    %v857 = vunpack.c.l.b16 %v550
    %v858 = vunpack.c.l.b16 %v551
    %v859 = vunpack.c.h.b16 %v551
    %v860 = vunpack.c.l.b16 %v552
    %v861 = vunpack.c.l.b16 %v553
    %v862 = vunpack.c.h.b16 %v553
    %v863 = vunpack.c.l.b16 %v554
    %v864 = vunpack.c.l.b16 %v555
    %v865 = vunpack.c.h.b16 %v555
    %v866 = vunpack.c.l.b16 %v556
    %v867 = vunpack.c.l.b16 %v557
    %v868 = vunpack.c.h.b16 %v557
    %v869 = vunpack.c.l.b16 %v558
    %v870 = vunpack.c.l.b16 %v559
    %v871 = vunpack.c.h.b16 %v559
    %v872 = vunpack.c.l.b16 %v560
    %v873 = vunpack.c.l.b16 %v561
    %v874 = vunpack.c.h.b16 %v561
    %v875 = vunpack.c.l.b16 %v562
    %v876 = vunpack.c.l.b16 %v563
    %v877 = vunpack.c.h.b16 %v563
    %v878 = vunpack.c.l.b16 %v564
    %v879 = vunpack.c.l.b16 %v565
    %v880 = vunpack.c.h.b16 %v565
    %v881 = vunpack.c.l.b16 %v566
    %v882 = vunpack.c.l.b16 %v567
    %v883 = vunpack.c.h.b16 %v567
    %v884 = vunpack.c.l.b16 %v568
    %v885 = vunpack.c.l.b16 %v569
    %v886 = vunpack.c.h.b16 %v569
    %v887 = vunpack.c.l.b16 %v570
    %v888 = vunpack.c.l.b16 %v571
    %v889 = vunpack.c.h.b16 %v571
    %v890 = vunpack.c.l.b16 %v572
    %v891 = vunpack.c.l.b16 %v573
    %v892 = vunpack.c.h.b16 %v573
    %v893 = vunpack.c.l.b16 %v574
    %v894 = vunpack.c.l.b16 %v575
    %v895 = vunpack.c.h.b16 %v575
    %v896 = vunpack.c.l.b16 %v576
    %v897 = vunpack.c.l.b16 %v577
    %v898 = vunpack.c.h.b16 %v577
    %v899 = vunpack.c.l.b16 %v578
    %v900 = vunpack.c.l.b16 %v579
    %v901 = vunpack.c.h.b16 %v579
    %v902 = vunpack.c.l.b16 %v580
    %v903 = vunpack.c.l.b16 %v581
    %v904 = vunpack.c.h.b16 %v581
    %v905 = vunpack.c.l.b16 %v582
    %v906 = vunpack.c.l.b16 %v583
    %v907 = vunpack.c.h.b16 %v583
    %v908 = vunpack.c.l.b16 %v584
    %v909 = vunpack.c.l.b16 %v585
    %v910 = vunpack.c.h.b16 %v585
    %v911 = vunpack.c.l.b16 %v586
    %v912 = vunpack.c.l.b16 %v587
    %v913 = vunpack.c.h.b16 %v587
    %v914 = vunpack.c.l.b16 %v588
    %v915 = vunpack.c.l.b16 %v589
    %v916 = vunpack.c.h.b16 %v589
    %v917 = vunpack.c.l.b16 %v590
    %v918 = vunpack.c.l.b16 %v591
    %v919 = vunpack.c.h.b16 %v591
    %v920 = vunpack.c.l.b16 %v592
    %v921 = vunpack.c.l.b16 %v593
    %v922 = vunpack.c.h.b16 %v593
    %v923 = vunpack.c.l.b16 %v594
    %v924 = vunpack.c.l.b16 %v595
    %v925 = vunpack.c.h.b16 %v595
    %v926 = vunpack.c.l.b16 %v596
    %v927 = vunpack.c.l.b16 %v597
    %v928 = vunpack.c.h.b16 %v597
    %v929 = vunpack.c.l.b16 %v598
    %v930 = vunpack.c.l.b16 %v599
    %v931 = vunpack.c.h.b16 %v599
    %v932 = vunpack.c.l.b16 %v600
    %v933 = vunpack.c.l.b16 %v601
    %v934 = vunpack.c.h.b16 %v601
    %v935 = vunpack.c.l.b16 %v602
    %v936 = vunpack.c.l.b16 %v603
    %v937 = vunpack.c.h.b16 %v603
    %v938 = vunpack.c.l.b16 %v604
    %v939 = vunpack.c.l.b16 %v605
    %v940 = vunpack.c.h.b16 %v605
    %v941 = vunpack.c.l.b16 %v606
    %v942 = vunpack.c.l.b16 %v607
    %v943 = vunpack.c.h.b16 %v607
    %v944 = vunpack.c.l.b16 %v608
    %v945 = vunpack.c.l.b16 %v609
    %v946 = vunpack.c.h.b16 %v609
    %v947 = vunpack.c.l.b16 %v610
    %v948 = vpack.c.b16 %v759, %v756
    %v949 = vpack.c.b16 %v760, %v757
    %v950 = vpack.c.b16 %v761, %v758
    %v951 = vpack.c.b16 %v765, %v762
    %v952 = vpack.c.b16 %v766, %v763
    %v953 = vpack.c.b16 %v767, %v764
    %v954 = vpack.c.b16 %v771, %v768
    %v955 = vpack.c.b16 %v772, %v769
    %v956 = vpack.c.b16 %v773, %v770
    %v957 = vpack.c.b16 %v777, %v774
    %v958 = vpack.c.b16 %v778, %v775
    %v959 = vpack.c.b16 %v779, %v776
    %v960 = vpack.c.b16 %v783, %v780
    %v961 = vpack.c.b16 %v784, %v781
    %v962 = vpack.c.b16 %v785, %v782
    %v963 = vpack.c.b16 %v789, %v786
    %v964 = vpack.c.b16 %v790, %v787
    %v965 = vpack.c.b16 %v791, %v788
    %v966 = vpack.c.b16 %v795, %v792
    %v967 = vpack.c.b16 %v796, %v793
    %v968 = vpack.c.b16 %v797, %v794
    %v969 = vpack.c.b16 %v801, %v798
    %v970 = vpack.c.b16 %v802, %v799
    %v971 = vpack.c.b16 %v803, %v800
    %v972 = vpack.c.b16 %v807, %v804
    %v973 = vpack.c.b16 %v808, %v805
    %v974 = vpack.c.b16 %v809, %v806
    %v975 = vpack.c.b16 %v813, %v810
    %v976 = vpack.c.b16 %v814, %v811
    %v977 = vpack.c.b16 %v815, %v812
    %v978 = vpack.c.b16 %v819, %v816
    %v979 = vpack.c.b16 %v820, %v817
    %v980 = vpack.c.b16 %v821, %v818
    %v981 = vpack.c.b16 %v825, %v822
    %v982 = vpack.c.b16 %v826, %v823
    %v983 = vpack.c.b16 %v827, %v824
    %v984 = vpack.c.b16 %v831, %v828
    %v985 = vpack.c.b16 %v832, %v829
    %v986 = vpack.c.b16 %v833, %v830
    %v987 = vpack.c.b16 %v837, %v834
    %v988 = vpack.c.b16 %v838, %v835
    %v989 = vpack.c.b16 %v839, %v836
    %v990 = vpack.c.b16 %v843, %v840
    %v991 = vpack.c.b16 %v844, %v841
    %v992 = vpack.c.b16 %v845, %v842
    %v993 = vpack.c.b16 %v849, %v846
    %v994 = vpack.c.b16 %v850, %v847
    %v995 = vpack.c.b16 %v851, %v848
    %v996 = vpack.c.b16 %v855, %v852
    %v997 = vpack.c.b16 %v856, %v853
    %v998 = vpack.c.b16 %v857, %v854
    %v999 = vpack.c.b16 %v861, %v858
    %v1000 = vpack.c.b16 %v862, %v859
    %v1001 = vpack.c.b16 %v863, %v860
    %v1002 = vpack.c.b16 %v867, %v864
    %v1003 = vpack.c.b16 %v868, %v865
    %v1004 = vpack.c.b16 %v869, %v866
    %v1005 = vpack.c.b16 %v873, %v870
    %v1006 = vpack.c.b16 %v874, %v871
    %v1007 = vpack.c.b16 %v875, %v872
    %v1008 = vpack.c.b16 %v879, %v876
    %v1009 = vpack.c.b16 %v880, %v877
    %v1010 = vpack.c.b16 %v881, %v878
    %v1011 = vpack.c.b16 %v885, %v882
    %v1012 = vpack.c.b16 %v886, %v883
    %v1013 = vpack.c.b16 %v887, %v884
    %v1014 = vpack.c.b16 %v891, %v888
    %v1015 = vpack.c.b16 %v892, %v889
    %v1016 = vpack.c.b16 %v893, %v890
    %v1017 = vpack.c.b16 %v897, %v894
    %v1018 = vpack.c.b16 %v898, %v895
    %v1019 = vpack.c.b16 %v899, %v896
    %v1020 = vpack.c.b16 %v903, %v900
    %v1021 = vpack.c.b16 %v904, %v901
    %v1022 = vpack.c.b16 %v905, %v902
    %v1023 = vpack.c.b16 %v909, %v906
    %v1024 = vpack.c.b16 %v910, %v907
    %v1025 = vpack.c.b16 %v911, %v908
    %v1026 = vpack.c.b16 %v915, %v912
    %v1027 = vpack.c.b16 %v916, %v913
    %v1028 = vpack.c.b16 %v917, %v914
    %v1029 = vpack.c.b16 %v921, %v918
    %v1030 = vpack.c.b16 %v922, %v919
    %v1031 = vpack.c.b16 %v923, %v920
    %v1032 = vpack.c.b16 %v927, %v924
    %v1033 = vpack.c.b16 %v928, %v925
    %v1034 = vpack.c.b16 %v929, %v926
    %v1035 = vpack.c.b16 %v933, %v930
    %v1036 = vpack.c.b16 %v934, %v931
    %v1037 = vpack.c.b16 %v935, %v932
    %v1038 = vpack.c.b16 %v939, %v936
    %v1039 = vpack.c.b16 %v940, %v937
    %v1040 = vpack.c.b16 %v941, %v938
    %v1041 = vpack.c.b16 %v945, %v942
    %v1042 = vpack.c.b16 %v946, %v943
    %v1043 = vpack.c.b16 %v947, %v944
    %1140 = vmatprep.subr.bf16.mxu0 %v949
    %1141 = vmatpush1.bf16.msra.mxu0 %v948
    %1142 = vmatprep.subr.bf16.mxu0 %v952
    %1143 = vmatpush1.bf16.msra.mxu0 %v951
    %1144 = vmatprep.subr.bf16.mxu0 %v955
    %1145 = vmatpush1.bf16.msra.mxu0 %v954
    %1146 = vmatprep.subr.bf16.mxu0 %v958
    %1147 = vmatpush1.bf16.msra.mxu0 %v957
    %1148 = vmatprep.subr.bf16.mxu0 %v961
    %1149 = vmatpush1.bf16.msra.mxu0 %v960
    %1150 = vmatprep.subr.bf16.mxu0 %v964
    %1151 = vmatpush1.bf16.msra.mxu0 %v963
    %1152 = vmatprep.subr.bf16.mxu0 %v967
    %1153 = vmatpush1.bf16.msra.mxu0 %v966
    %1154 = vmatprep.subr.bf16.mxu0 %v970
    %1155 = vmatpush1.bf16.msra.mxu0 %v969
    %1156 = vmatprep.subr.bf16.mxu0 %v973
    %1157 = vmatpush1.bf16.msra.mxu0 %v972
    %1158 = vmatprep.subr.bf16.mxu0 %v976
    %1159 = vmatpush1.bf16.msra.mxu0 %v975
    %1160 = vmatprep.subr.bf16.mxu0 %v979
    %1161 = vmatpush1.bf16.msra.mxu0 %v978
    %1162 = vmatprep.subr.bf16.mxu0 %v982
    %1163 = vmatpush1.bf16.msra.mxu0 %v981
    %1164 = vmatprep.subr.bf16.mxu0 %v985
    %1165 = vmatpush1.bf16.msra.mxu0 %v984
    %1166 = vmatprep.subr.bf16.mxu0 %v988
    %1167 = vmatpush1.bf16.msra.mxu0 %v987
    %1168 = vmatprep.subr.bf16.mxu0 %v991
    %1169 = vmatpush1.bf16.msra.mxu0 %v990
    %1170 = vmatprep.subr.bf16.mxu0 %v994
    %1171 = vmatpush1.bf16.msra.mxu0 %v993
    %1172 = vmatprep.mubr.bf16.mxu0 %v480
    %1173 = vmatmul.mubr.bf16.gmra.mrb[0].mxu0 %v479
    %v1174 = vpop.f32.mrb[0].mxu0
    %v1175 = vadd.f32 %v616, %v1174
    %v1176 = vpop.f32.mrb[0].mxu0
    %v1177 = vadd.f32 %v620, %v1176
    %v1178 = vpop.f32.mrb[0].mxu0
    %v1179 = vadd.f32 %v616, %v1178
    %v1180 = vpop.f32.mrb[0].mxu0
    %v1181 = vadd.f32 %v620, %v1180
    %1182 = vdwg.mxu0
    %1183 = vmatprep.subr.bf16.mxu0 %v997
    %1184 = vmatpush1.bf16.msra.mxu0 %v996
    %1185 = vmatprep.subr.bf16.mxu0 %v1000
    %1186 = vmatpush1.bf16.msra.mxu0 %v999
    %1187 = vmatprep.subr.bf16.mxu0 %v1003
    %1188 = vmatpush1.bf16.msra.mxu0 %v1002
    %1189 = vmatprep.subr.bf16.mxu0 %v1006
    %1190 = vmatpush1.bf16.msra.mxu0 %v1005
    %1191 = vmatprep.subr.bf16.mxu0 %v1009
    %1192 = vmatpush1.bf16.msra.mxu0 %v1008
    %1193 = vmatprep.subr.bf16.mxu0 %v1012
    %1194 = vmatpush1.bf16.msra.mxu0 %v1011
    %1195 = vmatprep.subr.bf16.mxu0 %v1015
    %1196 = vmatpush1.bf16.msra.mxu0 %v1014
    %1197 = vmatprep.subr.bf16.mxu0 %v1018
    %1198 = vmatpush1.bf16.msra.mxu0 %v1017
    %1199 = vmatprep.subr.bf16.mxu0 %v1021
    %1200 = vmatpush1.bf16.msra.mxu0 %v1020
    %1201 = vmatprep.subr.bf16.mxu0 %v1024
    %1202 = vmatpush1.bf16.msra.mxu0 %v1023
    %1203 = vmatprep.subr.bf16.mxu0 %v1027
    %1204 = vmatpush1.bf16.msra.mxu0 %v1026
    %1205 = vmatprep.subr.bf16.mxu0 %v1030
    %1206 = vmatpush1.bf16.msra.mxu0 %v1029
    %1207 = vmatprep.subr.bf16.mxu0 %v1033
    %1208 = vmatpush1.bf16.msra.mxu0 %v1032
    %1209 = vmatprep.subr.bf16.mxu0 %v1036
    %1210 = vmatpush1.bf16.msra.mxu0 %v1035
    %1211 = vmatprep.subr.bf16.mxu0 %v1039
    %1212 = vmatpush1.bf16.msra.mxu0 %v1038
    %1213 = vmatprep.subr.bf16.mxu0 %v1042
    %1214 = vmatpush1.bf16.msra.mxu0 %v1041
    %1215 = vmatprep.mubr.bf16.mxu0 %v482
    %1216 = vmatmul.mubr.bf16.gmra.mrb[0].mxu0 %v481
    %v1217 = vpop.f32.mrb[0].mxu0
    %v1218 = vadd.f32 %v1175, %v1217
    %v1219 = vpop.f32.mrb[0].mxu0
    %v1220 = vadd.f32 %v1177, %v1219
    %v1221 = vpop.f32.mrb[0].mxu0
    %v1222 = vadd.f32 %v1179, %v1221
    %v1223 = vpop.f32.mrb[0].mxu0
    %v1224 = vadd.f32 %v1181, %v1223
    %1225 = vdwg.mxu0
    %1226 = vmatprep.subr.bf16.mxu0 0
    %1227 = vmatpush1.bf16.msra.mxu0 %v950
    %1228 = vmatprep.subr.bf16.mxu0 0
    %1229 = vmatpush1.bf16.msra.mxu0 %v953
    %1230 = vmatprep.subr.bf16.mxu0 0
    %1231 = vmatpush1.bf16.msra.mxu0 %v956
    %1232 = vmatprep.subr.bf16.mxu0 0
    %1233 = vmatpush1.bf16.msra.mxu0 %v959
    %1234 = vmatprep.subr.bf16.mxu0 0
    %1235 = vmatpush1.bf16.msra.mxu0 %v962
    %1236 = vmatprep.subr.bf16.mxu0 0
    %1237 = vmatpush1.bf16.msra.mxu0 %v965
    %1238 = vmatprep.subr.bf16.mxu0 0
    %1239 = vmatpush1.bf16.msra.mxu0 %v968
    %1240 = vmatprep.subr.bf16.mxu0 0
    %1241 = vmatpush1.bf16.msra.mxu0 %v971
    %1242 = vmatprep.subr.bf16.mxu0 0
    %1243 = vmatpush1.bf16.msra.mxu0 %v974
    %1244 = vmatprep.subr.bf16.mxu0 0
    %1245 = vmatpush1.bf16.msra.mxu0 %v977
    %1246 = vmatprep.subr.bf16.mxu0 0
    %1247 = vmatpush1.bf16.msra.mxu0 %v980
    %1248 = vmatprep.subr.bf16.mxu0 0
    %1249 = vmatpush1.bf16.msra.mxu0 %v983
    %1250 = vmatprep.subr.bf16.mxu0 0
    %1251 = vmatpush1.bf16.msra.mxu0 %v986
    %1252 = vmatprep.subr.bf16.mxu0 0
    %1253 = vmatpush1.bf16.msra.mxu0 %v989
    %1254 = vmatprep.subr.bf16.mxu0 0
    %1255 = vmatpush1.bf16.msra.mxu0 %v992
    %1256 = vmatprep.subr.bf16.mxu0 0
    %1257 = vmatpush1.bf16.msra.mxu0 %v995
    %1258 = vmatprep.mubr.bf16.mxu0 %v480
    %1259 = vmatmul.mubr.bf16.gmra.mrb[0].mxu0 %v479
    %v1260 = vpop.f32.mrb[0].mxu0
    %v1261 = vadd.f32 %v624, %v1260
    %v1262 = vpop.f32.mrb[0].mxu0
    %v1263 = vpop.f32.mrb[0].mxu0
    %v1264 = vadd.f32 %v624, %v1263
    %v1265 = vpop.f32.mrb[0].mxu0
    %1266 = vdwg.mxu0
    %1267 = vmatprep.subr.bf16.mxu0 0
    %1268 = vmatpush1.bf16.msra.mxu0 %v998
    %1269 = vmatprep.subr.bf16.mxu0 0
    %1270 = vmatpush1.bf16.msra.mxu0 %v1001
    %1271 = vmatprep.subr.bf16.mxu0 0
    %1272 = vmatpush1.bf16.msra.mxu0 %v1004
    %1273 = vmatprep.subr.bf16.mxu0 0
    %1274 = vmatpush1.bf16.msra.mxu0 %v1007
    %1275 = vmatprep.subr.bf16.mxu0 0
    %1276 = vmatpush1.bf16.msra.mxu0 %v1010
    %1277 = vmatprep.subr.bf16.mxu0 0
    %1278 = vmatpush1.bf16.msra.mxu0 %v1013
    %1279 = vmatprep.subr.bf16.mxu0 0
    %1280 = vmatpush1.bf16.msra.mxu0 %v1016
    %1281 = vmatprep.subr.bf16.mxu0 0
    %1282 = vmatpush1.bf16.msra.mxu0 %v1019
    %1283 = vmatprep.subr.bf16.mxu0 0
    %1284 = vmatpush1.bf16.msra.mxu0 %v1022
    %1285 = vmatprep.subr.bf16.mxu0 0
    %1286 = vmatpush1.bf16.msra.mxu0 %v1025
    %1287 = vmatprep.subr.bf16.mxu0 0
    %1288 = vmatpush1.bf16.msra.mxu0 %v1028
    %1289 = vmatprep.subr.bf16.mxu0 0
    %1290 = vmatpush1.bf16.msra.mxu0 %v1031
    %1291 = vmatprep.subr.bf16.mxu0 0
    %1292 = vmatpush1.bf16.msra.mxu0 %v1034
    %1293 = vmatprep.subr.bf16.mxu0 0
    %1294 = vmatpush1.bf16.msra.mxu0 %v1037
    %1295 = vmatprep.subr.bf16.mxu0 0
    %1296 = vmatpush1.bf16.msra.mxu0 %v1040
    %1297 = vmatprep.subr.bf16.mxu0 0
    %1298 = vmatpush1.bf16.msra.mxu0 %v1043
    %1299 = vmatprep.mubr.bf16.mxu0 %v482
    %1300 = vmatmul.mubr.bf16.gmra.mrb[0].mxu0 %v481
    %v1301 = vpop.f32.mrb[0].mxu0
    %v1302 = vadd.f32 %v1261, %v1301
    %v1303 = vpop.f32.mrb[0].mxu0
    %v1304 = vpop.f32.mrb[0].mxu0
    %v1305 = vadd.f32 %v1264, %v1304
    %v1306 = vpop.f32.mrb[0].mxu0
    %1307 = vdwg.mxu0
    %v1308 = vmax.f32 %v1218, 0.0
    %v1309 = vmax.f32 %v1220, 0.0
    %v1310 = vmax.f32 %v1222, 0.0
    %v1311 = vmax.f32 %v1224, 0.0
    %v1312 = vpack.c.bf16 %v1310, %v1308
    %v1313 = vpack.c.bf16 %v1311, %v1309
    %v1314 = vld [vmem:[#allocation6] sm:$0xf]
    %v1315 = vld [vmem:[#allocation6 + $0x4] sm:$0xf]
    %v1316 = vld [vmem:[#allocation6 + $0x8] sm:$0xf]
    %v1317 = vld [vmem:[#allocation6 + $0xc] sm:$0xf]
    %v1318 = vld [vmem:[#allocation6 + $0x10] sm:$0xf]
    %v1319 = vld [vmem:[#allocation6 + $0x14] sm:$0xf]
    %v1320 = vld [vmem:[#allocation6 + $0x18] sm:$0xf]
    %v1321 = vld [vmem:[#allocation6 + $0x1c] sm:$0xf]
    %v1322 = vld [vmem:[#allocation6 + $0x20] sm:$0xf]
    %v1323 = vld [vmem:[#allocation6 + $0x24] sm:$0xf]
    %v1324 = vld [vmem:[#allocation6 + $0x28] sm:$0xf]
    %v1325 = vld [vmem:[#allocation6 + $0x2c] sm:$0xf]
    %v1326 = vld [vmem:[#allocation6 + $0x30] sm:$0xf]
    %v1327 = vld [vmem:[#allocation6 + $0x34] sm:$0xf]
    %v1328 = vld [vmem:[#allocation6 + $0x38] sm:$0xf]
    %v1329 = vld [vmem:[#allocation6 + $0x3c] sm:$0xf]
    %v1330 = vld [vmem:[#allocation6 + $0x40] sm:$0xf]
    %v1331 = vld [vmem:[#allocation6 + $0x44] sm:$0xf]
    %v1332 = vld [vmem:[#allocation6 + $0x48] sm:$0xf]
    %v1333 = vld [vmem:[#allocation6 + $0x4c] sm:$0xf]
    %v1334 = vld [vmem:[#allocation6 + $0x50] sm:$0xf]
    %v1335 = vld [vmem:[#allocation6 + $0x54] sm:$0xf]
    %v1336 = vld [vmem:[#allocation6 + $0x58] sm:$0xf]
    %v1337 = vld [vmem:[#allocation6 + $0x5c] sm:$0xf]
    %v1338 = vld [vmem:[#allocation6 + $0x60] sm:$0xf]
    %v1339 = vld [vmem:[#allocation6 + $0x64] sm:$0xf]
    %v1340 = vld [vmem:[#allocation6 + $0x68] sm:$0xf]
    %v1341 = vld [vmem:[#allocation6 + $0x6c] sm:$0xf]
    %v1342 = vld [vmem:[#allocation6 + $0x70] sm:$0xf]
    %v1343 = vld [vmem:[#allocation6 + $0x74] sm:$0xf]
    %v1344 = vld [vmem:[#allocation6 + $0x78] sm:$0xf]
    %v1345 = vld [vmem:[#allocation6 + $0x7c] sm:$0xf]
    %v1378 = vunpack.c.l.b16 %v1314
    %v1379 = vunpack.c.l.b16 %v1315
    %v1380 = vunpack.c.l.b16 %v1316
    %v1381 = vunpack.c.l.b16 %v1317
    %v1382 = vunpack.c.l.b16 %v1318
    %v1383 = vunpack.c.l.b16 %v1319
    %v1384 = vunpack.c.l.b16 %v1320
    %v1385 = vunpack.c.l.b16 %v1321
    %v1386 = vunpack.c.l.b16 %v1322
    %v1387 = vunpack.c.l.b16 %v1323
    %v1388 = vunpack.c.l.b16 %v1324
    %v1389 = vunpack.c.l.b16 %v1325
    %v1390 = vunpack.c.l.b16 %v1326
    %v1391 = vunpack.c.l.b16 %v1327
    %v1392 = vunpack.c.l.b16 %v1328
    %v1393 = vunpack.c.l.b16 %v1329
    %v1394 = vunpack.c.l.b16 %v1330
    %v1395 = vunpack.c.l.b16 %v1331
    %v1396 = vunpack.c.l.b16 %v1332
    %v1397 = vunpack.c.l.b16 %v1333
    %v1398 = vunpack.c.l.b16 %v1334
    %v1399 = vunpack.c.l.b16 %v1335
    %v1400 = vunpack.c.l.b16 %v1336
    %v1401 = vunpack.c.l.b16 %v1337
    %v1402 = vunpack.c.l.b16 %v1338
    %v1403 = vunpack.c.l.b16 %v1339
    %v1404 = vunpack.c.l.b16 %v1340
    %v1405 = vunpack.c.l.b16 %v1341
    %v1406 = vunpack.c.l.b16 %v1342
    %v1407 = vunpack.c.l.b16 %v1343
    %v1408 = vunpack.c.l.b16 %v1344
    %v1409 = vunpack.c.l.b16 %v1345
    %v1410 = vpack.c.b16 %v1379, %v1378
    %v1411 = vpack.c.b16 %v1381, %v1380
    %v1412 = vpack.c.b16 %v1383, %v1382
    %v1413 = vpack.c.b16 %v1385, %v1384
    %v1414 = vpack.c.b16 %v1387, %v1386
    %v1415 = vpack.c.b16 %v1389, %v1388
    %v1416 = vpack.c.b16 %v1391, %v1390
    %v1417 = vpack.c.b16 %v1393, %v1392
    %v1418 = vpack.c.b16 %v1395, %v1394
    %v1419 = vpack.c.b16 %v1397, %v1396
    %v1420 = vpack.c.b16 %v1399, %v1398
    %v1421 = vpack.c.b16 %v1401, %v1400
    %v1422 = vpack.c.b16 %v1403, %v1402
    %v1423 = vpack.c.b16 %v1405, %v1404
    %v1424 = vpack.c.b16 %v1407, %v1406
    %v1425 = vpack.c.b16 %v1409, %v1408
    %1442 = vmatprep.subr.bf16.mxu0 0
    %1443 = vmatpush1.bf16.msra.mxu0 %v1410
    %1444 = vmatprep.subr.bf16.mxu0 0
    %1445 = vmatpush1.bf16.msra.mxu0 %v1411
    %1446 = vmatprep.subr.bf16.mxu0 0
    %1447 = vmatpush1.bf16.msra.mxu0 %v1412
    %1448 = vmatprep.subr.bf16.mxu0 0
    %1449 = vmatpush1.bf16.msra.mxu0 %v1413
    %1450 = vmatprep.subr.bf16.mxu0 0
    %1451 = vmatpush1.bf16.msra.mxu0 %v1414
    %1452 = vmatprep.subr.bf16.mxu0 0
    %1453 = vmatpush1.bf16.msra.mxu0 %v1415
    %1454 = vmatprep.subr.bf16.mxu0 0
    %1455 = vmatpush1.bf16.msra.mxu0 %v1416
    %1456 = vmatprep.subr.bf16.mxu0 0
    %1457 = vmatpush1.bf16.msra.mxu0 %v1417
    %1458 = vmatprep.subr.bf16.mxu0 0
    %1459 = vmatpush1.bf16.msra.mxu0 %v1418
    %1460 = vmatprep.subr.bf16.mxu0 0
    %1461 = vmatpush1.bf16.msra.mxu0 %v1419
    %1462 = vmatprep.subr.bf16.mxu0 0
    %1463 = vmatpush1.bf16.msra.mxu0 %v1420
    %1464 = vmatprep.subr.bf16.mxu0 0
    %1465 = vmatpush1.bf16.msra.mxu0 %v1421
    %1466 = vmatprep.subr.bf16.mxu0 0
    %1467 = vmatpush1.bf16.msra.mxu0 %v1422
    %1468 = vmatprep.subr.bf16.mxu0 0
    %1469 = vmatpush1.bf16.msra.mxu0 %v1423
    %1470 = vmatprep.subr.bf16.mxu0 0
    %1471 = vmatpush1.bf16.msra.mxu0 %v1424
    %1472 = vmatprep.subr.bf16.mxu0 0
    %1473 = vmatpush1.bf16.msra.mxu0 %v1425
    %1474 = vmatprep.mubr.bf16.mxu0 %v1313
    %1475 = vmatmul.mubr.bf16.gmra.mrb[0].mxu0 %v1312
    %v1476 = vpop.f32.mrb[0].mxu0
    %v1477 = vadd.f32 0.0, %v1476
    %v1478 = vpop.f32.mrb[0].mxu0
    %v1479 = vpop.f32.mrb[0].mxu0
    %v1480 = vadd.f32 0.0, %v1479
    %v1481 = vpop.f32.mrb[0].mxu0
    %1482 = vdwg.mxu0
    %v1483 = vadd.f32 %v1302, %v1477
    %v1484 = vadd.f32 %v1305, %v1480
    %v1487 = vunpack.c.l.b16 %v1312
    %v1488 = vunpack.c.l.b16 %v1313
    %v1489 = vunpack.c.h.b16 %v1312
    %v1490 = vunpack.c.h.b16 %v1313
    %v1491 = vpack.c.b16 %v1488, %v1487
    %v1492 = vpack.c.b16 %v1490, %v1489
    %1495 = vst [vmem:[%s6] sm:$0xff] %v1491
    %1496 = vst [vmem:[%s6 + $0xc] sm:$0xff] %v1492
    %v1497 = vpack.c.bf16 %v1484, %v1483
    %v1499 = vunpack.c.l.b16 %v1497
    %v1500 = vunpack.c.h.b16 %v1497
    %v1501 = vpack.c.b16 %v1499, %v1499
    %v1502 = vpack.c.b16 %v1500, %v1500
    %1505 = vst [vmem:[%s6 + $0x8] sm:$0xf] %v1501
    %1506 = vst [vmem:[%s6 + $0x14] sm:$0xf] %v1502
    // Predicated region
    $region38: #{scale_block_forward.1} parent=1 // pred_check
      _
    $region39: #{scale_block_forward.1} parent=1 // pred_check_branch
      %1508 = sbr.rel (0) target = $region41
    $region40: #{scale_block_forward.1} parent=1 // pred_region
      _
    $region41: #{scale_block_forward.1} parent=1 // pred_fallthru
      _
    // Predicated region
    $region42: #{scale_block_forward.1} parent=1 // pred_check
      _
    $region43: #{scale_block_forward.1} parent=1 // pred_check_branch
      %1510 = sbr.rel (0) target = $region45
    $region44: #{scale_block_forward.1} parent=1 // pred_region
      _
    $region45: #{scale_block_forward.1} parent=1 // pred_fallthru
      _
    %1511 = vsyncpa [#allocation3], 1
    %1512 = vsyncpa [#allocation5], 1

</llo_original>
